<compile_context>
chip_gen: v7x
topology: tpu7x:2x2x1
jax: 0.10.0
libtpu: 0.0.40
codegen_flags: <defaults>
</compile_context>

<pallas_src>
import jax
import jax.numpy as jnp
from jax.experimental import pallas as pl
from jax.experimental.pallas import tpu as pltpu


_IGNORE_INDEX = -100   # PyTorch nn.CrossEntropyLoss default.
_MAX_PACK = 16         # cap on rows packed per 128-lane row (bounds unrolled code)


# ----------------------------------------------------------------------------- kernel


def _make_ce_kernel(batch, block_rows, k, num_classes, ignore_index):
    """Kernel computing one tile's partial CE sum and valid-target count.

    The logits tile is (block_rows, k*num_classes): each VMEM row packs k
    consecutive original rows, each occupying lanes [j*C, (j+1)*C).  k == 1
    is the unpacked layout (C >= 128 or batch not divisible by k).
    """

    def kernel(logits_ref, labels_ref, partial_ref):
        x = logits_ref[...]                        # (TB, L), native dtype
        lbl = labels_ref[...]                      # (TB, k), int32
        tb, lanes = x.shape

        col = jax.lax.broadcasted_iota(jnp.int32, (tb, lanes), 1)
        row = jax.lax.broadcasted_iota(jnp.int32, (tb, 1), 0)
        # Original (unpacked) row index of segment 0 of each packed row.
        first_orig_row = (row + pl.program_id(0) * block_rows) * k

        # ---- per-segment row max, broadcast back to lanes, then ONE dense exp.
        # max/sub/exp stay in the input dtype (bf16 VPU/EUP on v6e/v7x; the
        # compiler upcasts to f32 on v5e); all reductions accumulate in f32.
        if k == 1:
            seg_masks = [None]
            seg_max = [jnp.max(x, axis=-1, keepdims=True)]           # (TB, 1)
            m_full = seg_max[0]
        else:
            neg = jnp.asarray(-jnp.inf, x.dtype)
            seg_masks, seg_max = [], []
            for j in range(k):
                sm = (col >= j * num_classes) & (col < (j + 1) * num_classes)
                seg_masks.append(sm)
                seg_max.append(
                    jnp.max(jnp.where(sm, x, neg), axis=-1, keepdims=True))
            m_full = jnp.where(seg_masks[0], seg_max[0], jnp.zeros((), x.dtype))
            for j in range(1, k):
                m_full = jnp.where(seg_masks[j], seg_max[j], m_full)

        e = jnp.exp(x - m_full)                                       # (TB, L)

        # ---- per-segment logsumexp + fused compare/select target gather.
        # NOTE: padded garbage rows of a ragged last tile (possibly NaN/inf)
        # are fully neutralized below because jnp.where is a SELECT on the
        # `valid` mask — do not sum lse/tgt before that select.
        loss_acc = jnp.zeros((tb, 1), jnp.float32)
        cnt_acc = jnp.zeros((tb, 1), jnp.float32)
        for j in range(k):
            e_j = e if k == 1 else jnp.where(seg_masks[j], e, jnp.zeros((), e.dtype))
            s_j = jnp.sum(e_j, axis=-1, keepdims=True, dtype=jnp.float32)
            lse_j = jnp.log(s_j) + seg_max[j].astype(jnp.float32)     # (TB, 1)

            lbl_j = lbl[:, j:j + 1]                                   # (TB, 1)
            tgt_j = jnp.sum(
                jnp.where(col == lbl_j + j * num_classes, x, jnp.zeros((), x.dtype)),
                axis=-1, keepdims=True, dtype=jnp.float32)            # (TB, 1)

            orig_row = first_orig_row + j
            valid_j = (orig_row < batch) & (lbl_j != ignore_index)
            loss_acc = loss_acc + jnp.where(valid_j, lse_j - tgt_j, 0.0)
            cnt_acc = cnt_acc + jnp.where(valid_j, 1.0, 0.0)

        # Per-tile partials -> lanes 0 (loss sum) and 1 (valid count) of row 0
        # of this tile's private (8, 128) output block; rest zeros.
        loss_sum = jnp.sum(loss_acc)
        cnt_sum = jnp.sum(cnt_acc)
        out_row = jax.lax.broadcasted_iota(jnp.int32, (8, 128), 0)
        out_col = jax.lax.broadcasted_iota(jnp.int32, (8, 128), 1)
        row0 = out_row == 0
        partial_ref[...] = jnp.where(
            row0 & (out_col == 0), loss_sum,
            jnp.where(row0 & (out_col == 1), cnt_sum, 0.0))

    return kernel


# ----------------------------------------------------------------------------- sizing


def _physical_vmem_bytes():
    try:
        return int(pltpu.get_tpu_info().vmem_capacity_bytes)
    except Exception:
        return 64 << 20   # conservative fallback (v7x per-TensorCore VMEM)


def _budgets():
    """(working budget for the tile+temporaries, scoped-VMEM limit to request)."""
    phys = _physical_vmem_bytes()
    work = min(phys // 3, 40 << 20)            # ~40 MiB on v5e/v6e, ~21 MiB on v7x
    limit = int(min(phys // 2, work + (8 << 20)))
    return work, limit


def _choose_block_rows(rows, lanes_padded, itemsize, budget):
    """Largest row tile whose 2x-buffered logits + f32/i32 temporaries fit `budget`.

    Temporaries (col iota, exp, where/select results) are charged at 4 B/elem
    regardless of the logits dtype: on v5e bf16 math is upcast to f32, and
    the int32 iota is always 4 B/elem.
    """
    per_row = lanes_padded * (2 * itemsize + 4 * 4)
    tb = max(1, budget // per_row)
    mult = 16 if itemsize == 2 else 8          # sublane packing (bf16: 2 rows/sublane)
    if rows > mult:
        # Prefer >=2 grid steps: enables DMA/compute overlap and lets
        # dimension_semantics=("parallel",) shard across v7x's 2 TensorCores.
        tb = min(tb, -(-rows // 2))
    if tb >= rows:
        return rows                            # full-extent block is always legal
    tb = max(mult, (tb // mult) * mult)
    return min(tb, rows)


# ----------------------------------------------------------------------------- wrapper


def cross_entropy_loss(out, preds, *, ignore_index=_IGNORE_INDEX,
                       block_rows=None, allow_packing=True):
    """Pallas equivalent of CustomLossBase.forward with a CrossEntropyLoss criterion.

    Args:
      out:   float logits, shape [B, C].
      preds: int class indices, shape [B] (label == ignore_index is excluded).
    Returns:
      scalar float32 mean cross-entropy over non-ignored targets.
      (If every label is ignored the result is 0/0 = NaN, matching torch's
      mean reduction.)
    """
    batch, num_classes = out.shape
    labels = preds.astype(jnp.int32)

    # Lane-dense packing for small class counts: pack k = 128//C consecutive
    # rows into one 128-lane row.  The reshape of a contiguous [B, C] array is
    # free (no HBM copy) and makes the DMA tile and all elementwise work dense.
    k = 1
    if allow_packing and num_classes < 128:
        kmax = min(128 // num_classes, _MAX_PACK)
        for cand in range(kmax, 1, -1):
            if batch % cand == 0:
                k = cand
                break
    rows = batch // k
    lanes = k * num_classes
    x2 = out.reshape(rows, lanes)
    lbl2 = labels.reshape(rows, k)

    itemsize = jnp.dtype(out.dtype).itemsize
    work_budget, vmem_limit = _budgets()
    lanes_padded = max(128, -(-lanes // 128) * 128)   # VMEM lane padding

    if block_rows is None:
        tb = _choose_block_rows(rows, lanes_padded, itemsize, work_budget)
    else:
        tb = min(block_rows, rows)
    num_tiles = pl.cdiv(rows, tb)

    kernel = _make_ce_kernel(batch, tb, k, num_classes, ignore_index)

    partials = pl.pallas_call(
        kernel,
        out_shape=jax.ShapeDtypeStruct((num_tiles * 8, 128), jnp.float32),
        grid=(num_tiles,),
        in_specs=[
            pl.BlockSpec((tb, lanes), lambda i: (i, 0)),
            pl.BlockSpec((tb, k), lambda i: (i, 0)),
        ],
        out_specs=pl.BlockSpec((8, 128), lambda i: (i, 0)),
        compiler_params=pltpu.CompilerParams(
            dimension_semantics=("parallel",),     # megacore sharding on v7x
            vmem_limit_bytes=vmem_limit,
        ),
        cost_estimate=pl.CostEstimate(
            flops=int(5 * batch * num_classes),
            transcendentals=int(batch * num_classes),
            bytes_accessed=int(batch * num_classes * itemsize
                               + batch * 4
                               + num_tiles * 8 * 128 * 4),
        ),
    )(x2, lbl2)

    # Tiny final reduction: column 0 = loss partials, column 1 = valid counts.
    total = jnp.sum(partials[:, 0])
    count = jnp.sum(partials[:, 1])
    return total / count


# ----------------------------------------------------------------------------- test


if __name__ == "__main__":
    key = jax.random.PRNGKey(0)
    k1, k2, k3, k4 = jax.random.split(key, 4)

    def reference(logits, labels, ignore=_IGNORE_INDEX):
        c = logits.shape[-1]
        logits32 = logits.astype(jnp.float32)
        lse = jax.nn.logsumexp(logits32, axis=-1)
        tgt = jnp.sum(jax.nn.one_hot(jnp.clip(labels, 0, c - 1), c,
                                     dtype=jnp.float32) * logits32, axis=-1)
        valid = labels != ignore
        return jnp.sum(jnp.where(valid, lse - tgt, 0.0)) / jnp.sum(valid).astype(jnp.float32)

    # Case 1: small class count -> lane-packed path (k = 128//C = 4),
    # gridded with a ragged last tile, plus an ignore_index label.
    B1, C1 = 88, 32
    logits1 = jax.random.normal(k1, (B1, C1), dtype=jnp.float32)
    labels1 = jax.random.randint(k2, (B1,), 0, C1, dtype=jnp.int32)
    labels1 = labels1.at[5].set(_IGNORE_INDEX)

    loss1 = cross_entropy_loss(logits1, labels1)
    jax.block_until_ready(loss1)
    ref1 = reference(logits1, labels1)
    assert jnp.allclose(loss1, ref1, rtol=1e-5, atol=1e-5), (loss1, ref1)

    # Same data through the unpacked (k = 1) path.
    loss1u = cross_entropy_loss(logits1, labels1, allow_packing=False)
    jax.block_until_ready(loss1u)
    assert jnp.allclose(loss1u, ref1, rtol=1e-5, atol=1e-5), (loss1u, ref1)

    # Case 2: class count > 128 -> unpacked, multi-tile, non-multiple-of-128 lanes.
    B2, C2 = 24, 200
    logits2 = jax.random.normal(k3, (B2, C2), dtype=jnp.float32)
    labels2 = jax.random.randint(k4, (B2,), 0, C2, dtype=jnp.int32)
    labels2 = labels2.at[0].set(_IGNORE_INDEX)

    loss2 = cross_entropy_loss(logits2, labels2)
    jax.block_until_ready(loss2)
    ref2 = reference(logits2, labels2)
    assert jnp.allclose(loss2, ref2, rtol=1e-5, atol=1e-5), (loss2, ref2)

    print("KERNEL_OK")
</pallas_src>

<mosaic_0001>
module attributes {stable_mosaic.version = 11 : i64} {
  func.func @kernel(%arg0: i32, %arg1: memref<8x128xf32, #tpu.memory_space<vmem>>, %arg2: memref<8x4xi32, #tpu.memory_space<vmem>>, %arg3: memref<8x128xf32, #tpu.memory_space<vmem>>) attributes {dimension_semantics = [#tpu.dimension_semantics<parallel>], iteration_bounds = array<i64: 3>, scalar_prefetch = 0 : i64, scratch_operands = 0 : i64, tpu.core_type = #tpu.core_type<tc>, window_params = [{transform_indices = @transform_0, window_bounds = array<i64: 8, 128>}, {transform_indices = @transform_1, window_bounds = array<i64: 8, 4>}, {transform_indices = @transform_2, window_bounds = array<i64: 8, 128>}]} {
    %c0 = arith.constant 0 : index
    %c0_0 = arith.constant 0 : index
    %0 = vector.load %arg1[%c0, %c0_0] : memref<8x128xf32, #tpu.memory_space<vmem>>, vector<8x128xf32>
    %c0_1 = arith.constant 0 : index
    %c0_2 = arith.constant 0 : index
    %1 = vector.load %arg2[%c0_1, %c0_2] : memref<8x4xi32, #tpu.memory_space<vmem>>, vector<8x4xi32>
    %2 = tpu.iota {dimensions = array<i32: 1>} : vector<8x128xi32>
    %3 = tpu.iota {dimensions = array<i32: 0>} : vector<8x1xi32>
    %c8_i32 = arith.constant 8 : i32
    %4 = arith.muli %arg0, %c8_i32 : i32
    %5 = vector.broadcast %4 : i32 to vector<8x1xi32>
    %6 = arith.addi %3, %5 : vector<8x1xi32>
    %c4_i32 = arith.constant 4 : i32
    %7 = vector.broadcast %c4_i32 : i32 to vector<8x1xi32>
    %8 = arith.muli %6, %7 : vector<8x1xi32>
    %c0_i32 = arith.constant 0 : i32
    %9 = vector.broadcast %c0_i32 : i32 to vector<8x128xi32>
    %10 = arith.cmpi sge, %2, %9 : vector<8x128xi32>
    %c32_i32 = arith.constant 32 : i32
    %11 = vector.broadcast %c32_i32 : i32 to vector<8x128xi32>
    %12 = arith.cmpi slt, %2, %11 : vector<8x128xi32>
    %13 = arith.andi %10, %12 : vector<8x128xi1>
    %cst = arith.constant 0xFF800000 : f32
    %14 = vector.broadcast %cst : f32 to vector<8x128xf32>
    %15 = arith.select %13, %0, %14 : vector<8x128xi1>, vector<8x128xf32>
    %cst_3 = arith.constant dense<0xFF800000> : vector<8xf32>
    %16 = vector.multi_reduction <maximumf>, %15, %cst_3 [1] : vector<8x128xf32> to vector<8xf32>
    %17 = vector.shape_cast %16 : vector<8xf32> to vector<8x1xf32>
    %c32_i32_4 = arith.constant 32 : i32
    %18 = vector.broadcast %c32_i32_4 : i32 to vector<8x128xi32>
    %19 = arith.cmpi sge, %2, %18 : vector<8x128xi32>
    %c64_i32 = arith.constant 64 : i32
    %20 = vector.broadcast %c64_i32 : i32 to vector<8x128xi32>
    %21 = arith.cmpi slt, %2, %20 : vector<8x128xi32>
    %22 = arith.andi %19, %21 : vector<8x128xi1>
    %cst_5 = arith.constant 0xFF800000 : f32
    %23 = vector.broadcast %cst_5 : f32 to vector<8x128xf32>
    %24 = arith.select %22, %0, %23 : vector<8x128xi1>, vector<8x128xf32>
    %cst_6 = arith.constant dense<0xFF800000> : vector<8xf32>
    %25 = vector.multi_reduction <maximumf>, %24, %cst_6 [1] : vector<8x128xf32> to vector<8xf32>
    %26 = vector.shape_cast %25 : vector<8xf32> to vector<8x1xf32>
    %c64_i32_7 = arith.constant 64 : i32
    %27 = vector.broadcast %c64_i32_7 : i32 to vector<8x128xi32>
    %28 = arith.cmpi sge, %2, %27 : vector<8x128xi32>
    %c96_i32 = arith.constant 96 : i32
    %29 = vector.broadcast %c96_i32 : i32 to vector<8x128xi32>
    %30 = arith.cmpi slt, %2, %29 : vector<8x128xi32>
    %31 = arith.andi %28, %30 : vector<8x128xi1>
    %cst_8 = arith.constant 0xFF800000 : f32
    %32 = vector.broadcast %cst_8 : f32 to vector<8x128xf32>
    %33 = arith.select %31, %0, %32 : vector<8x128xi1>, vector<8x128xf32>
    %cst_9 = arith.constant dense<0xFF800000> : vector<8xf32>
    %34 = vector.multi_reduction <maximumf>, %33, %cst_9 [1] : vector<8x128xf32> to vector<8xf32>
    %35 = vector.shape_cast %34 : vector<8xf32> to vector<8x1xf32>
    %c96_i32_10 = arith.constant 96 : i32
    %36 = vector.broadcast %c96_i32_10 : i32 to vector<8x128xi32>
    %37 = arith.cmpi sge, %2, %36 : vector<8x128xi32>
    %c128_i32 = arith.constant 128 : i32
    %38 = vector.broadcast %c128_i32 : i32 to vector<8x128xi32>
    %39 = arith.cmpi slt, %2, %38 : vector<8x128xi32>
    %40 = arith.andi %37, %39 : vector<8x128xi1>
    %cst_11 = arith.constant 0xFF800000 : f32
    %41 = vector.broadcast %cst_11 : f32 to vector<8x128xf32>
    %42 = arith.select %40, %0, %41 : vector<8x128xi1>, vector<8x128xf32>
    %cst_12 = arith.constant dense<0xFF800000> : vector<8xf32>
    %43 = vector.multi_reduction <maximumf>, %42, %cst_12 [1] : vector<8x128xf32> to vector<8xf32>
    %44 = vector.shape_cast %43 : vector<8xf32> to vector<8x1xf32>
    %cst_13 = arith.constant 0.000000e+00 : f32
    %45 = vector.shape_cast %17 : vector<8x1xf32> to vector<8x1xf32>
    %46 = vector.broadcast %45 : vector<8x1xf32> to vector<8x128xf32>
    %47 = vector.broadcast %cst_13 : f32 to vector<8x128xf32>
    %48 = arith.select %13, %46, %47 : vector<8x128xi1>, vector<8x128xf32>
    %49 = vector.shape_cast %26 : vector<8x1xf32> to vector<8x1xf32>
    %50 = vector.broadcast %49 : vector<8x1xf32> to vector<8x128xf32>
    %51 = arith.select %22, %50, %48 : vector<8x128xi1>, vector<8x128xf32>
    %52 = vector.shape_cast %35 : vector<8x1xf32> to vector<8x1xf32>
    %53 = vector.broadcast %52 : vector<8x1xf32> to vector<8x128xf32>
    %54 = arith.select %31, %53, %51 : vector<8x128xi1>, vector<8x128xf32>
    %55 = vector.shape_cast %44 : vector<8x1xf32> to vector<8x1xf32>
    %56 = vector.broadcast %55 : vector<8x1xf32> to vector<8x128xf32>
    %57 = arith.select %40, %56, %54 : vector<8x128xi1>, vector<8x128xf32>
    %58 = arith.subf %0, %57 : vector<8x128xf32>
    %59 = math.exp %58 : vector<8x128xf32>
    %cst_14 = arith.constant 0.000000e+00 : f32
    %60 = vector.broadcast %cst_14 : f32 to vector<8x1xf32>
    %cst_15 = arith.constant 0.000000e+00 : f32
    %61 = vector.broadcast %cst_15 : f32 to vector<8x1xf32>
    %cst_16 = arith.constant 0.000000e+00 : f32
    %62 = vector.broadcast %cst_16 : f32 to vector<8x128xf32>
    %63 = arith.select %13, %59, %62 : vector<8x128xi1>, vector<8x128xf32>
    %cst_17 = arith.constant dense<0.000000e+00> : vector<8xf32>
    %64 = vector.multi_reduction <add>, %63, %cst_17 [1] : vector<8x128xf32> to vector<8xf32>
    %65 = vector.shape_cast %64 : vector<8xf32> to vector<8x1xf32>
    %66 = math.log %65 : vector<8x1xf32>
    %67 = arith.addf %66, %17 : vector<8x1xf32>
    %68 = vector.extract_strided_slice %1 {offsets = [0, 0], sizes = [8, 1], strides = [1, 1]} : vector<8x4xi32> to vector<8x1xi32>
    %c0_i32_18 = arith.constant 0 : i32
    %69 = vector.broadcast %c0_i32_18 : i32 to vector<8x1xi32>
    %70 = arith.addi %68, %69 : vector<8x1xi32>
    %71 = vector.broadcast %70 : vector<8x1xi32> to vector<8x128xi32>
    %72 = arith.cmpi eq, %2, %71 : vector<8x128xi32>
    %cst_19 = arith.constant 0.000000e+00 : f32
    %73 = vector.broadcast %cst_19 : f32 to vector<8x128xf32>
    %74 = arith.select %72, %0, %73 : vector<8x128xi1>, vector<8x128xf32>
    %cst_20 = arith.constant dense<0.000000e+00> : vector<8xf32>
    %75 = vector.multi_reduction <add>, %74, %cst_20 [1] : vector<8x128xf32> to vector<8xf32>
    %76 = vector.shape_cast %75 : vector<8xf32> to vector<8x1xf32>
    %c0_i32_21 = arith.constant 0 : i32
    %77 = vector.broadcast %c0_i32_21 : i32 to vector<8x1xi32>
    %78 = arith.addi %8, %77 : vector<8x1xi32>
    %c88_i32 = arith.constant 88 : i32
    %79 = vector.broadcast %c88_i32 : i32 to vector<8x1xi32>
    %80 = arith.cmpi slt, %78, %79 : vector<8x1xi32>
    %c-100_i32 = arith.constant -100 : i32
    %81 = vector.broadcast %c-100_i32 : i32 to vector<8x1xi32>
    %82 = arith.cmpi ne, %68, %81 : vector<8x1xi32>
    %83 = arith.andi %80, %82 : vector<8x1xi1>
    %84 = arith.subf %67, %76 : vector<8x1xf32>
    %cst_22 = arith.constant 0.000000e+00 : f32
    %85 = vector.broadcast %cst_22 : f32 to vector<8x1xf32>
    %86 = arith.select %83, %84, %85 : vector<8x1xi1>, vector<8x1xf32>
    %87 = arith.addf %60, %86 : vector<8x1xf32>
    %cst_23 = arith.constant 1.000000e+00 : f32
    %cst_24 = arith.constant 0.000000e+00 : f32
    %88 = vector.broadcast %cst_23 : f32 to vector<8x1xf32>
    %89 = vector.broadcast %cst_24 : f32 to vector<8x1xf32>
    %90 = arith.select %83, %88, %89 : vector<8x1xi1>, vector<8x1xf32>
    %91 = arith.addf %61, %90 : vector<8x1xf32>
    %cst_25 = arith.constant 0.000000e+00 : f32
    %92 = vector.broadcast %cst_25 : f32 to vector<8x128xf32>
    %93 = arith.select %22, %59, %92 : vector<8x128xi1>, vector<8x128xf32>
    %cst_26 = arith.constant dense<0.000000e+00> : vector<8xf32>
    %94 = vector.multi_reduction <add>, %93, %cst_26 [1] : vector<8x128xf32> to vector<8xf32>
    %95 = vector.shape_cast %94 : vector<8xf32> to vector<8x1xf32>
    %96 = math.log %95 : vector<8x1xf32>
    %97 = arith.addf %96, %26 : vector<8x1xf32>
    %98 = vector.extract_strided_slice %1 {offsets = [0, 1], sizes = [8, 1], strides = [1, 1]} : vector<8x4xi32> to vector<8x1xi32>
    %c32_i32_27 = arith.constant 32 : i32
    %99 = vector.broadcast %c32_i32_27 : i32 to vector<8x1xi32>
    %100 = arith.addi %98, %99 : vector<8x1xi32>
    %101 = vector.broadcast %100 : vector<8x1xi32> to vector<8x128xi32>
    %102 = arith.cmpi eq, %2, %101 : vector<8x128xi32>
    %cst_28 = arith.constant 0.000000e+00 : f32
    %103 = vector.broadcast %cst_28 : f32 to vector<8x128xf32>
    %104 = arith.select %102, %0, %103 : vector<8x128xi1>, vector<8x128xf32>
    %cst_29 = arith.constant dense<0.000000e+00> : vector<8xf32>
    %105 = vector.multi_reduction <add>, %104, %cst_29 [1] : vector<8x128xf32> to vector<8xf32>
    %106 = vector.shape_cast %105 : vector<8xf32> to vector<8x1xf32>
    %c1_i32 = arith.constant 1 : i32
    %107 = vector.broadcast %c1_i32 : i32 to vector<8x1xi32>
    %108 = arith.addi %8, %107 : vector<8x1xi32>
    %c88_i32_30 = arith.constant 88 : i32
    %109 = vector.broadcast %c88_i32_30 : i32 to vector<8x1xi32>
    %110 = arith.cmpi slt, %108, %109 : vector<8x1xi32>
    %c-100_i32_31 = arith.constant -100 : i32
    %111 = vector.broadcast %c-100_i32_31 : i32 to vector<8x1xi32>
    %112 = arith.cmpi ne, %98, %111 : vector<8x1xi32>
    %113 = arith.andi %110, %112 : vector<8x1xi1>
    %114 = arith.subf %97, %106 : vector<8x1xf32>
    %cst_32 = arith.constant 0.000000e+00 : f32
    %115 = vector.broadcast %cst_32 : f32 to vector<8x1xf32>
    %116 = arith.select %113, %114, %115 : vector<8x1xi1>, vector<8x1xf32>
    %117 = arith.addf %87, %116 : vector<8x1xf32>
    %cst_33 = arith.constant 1.000000e+00 : f32
    %cst_34 = arith.constant 0.000000e+00 : f32
    %118 = vector.broadcast %cst_33 : f32 to vector<8x1xf32>
    %119 = vector.broadcast %cst_34 : f32 to vector<8x1xf32>
    %120 = arith.select %113, %118, %119 : vector<8x1xi1>, vector<8x1xf32>
    %121 = arith.addf %91, %120 : vector<8x1xf32>
    %cst_35 = arith.constant 0.000000e+00 : f32
    %122 = vector.broadcast %cst_35 : f32 to vector<8x128xf32>
    %123 = arith.select %31, %59, %122 : vector<8x128xi1>, vector<8x128xf32>
    %cst_36 = arith.constant dense<0.000000e+00> : vector<8xf32>
    %124 = vector.multi_reduction <add>, %123, %cst_36 [1] : vector<8x128xf32> to vector<8xf32>
    %125 = vector.shape_cast %124 : vector<8xf32> to vector<8x1xf32>
    %126 = math.log %125 : vector<8x1xf32>
    %127 = arith.addf %126, %35 : vector<8x1xf32>
    %128 = vector.extract_strided_slice %1 {offsets = [0, 2], sizes = [8, 1], strides = [1, 1]} : vector<8x4xi32> to vector<8x1xi32>
    %c64_i32_37 = arith.constant 64 : i32
    %129 = vector.broadcast %c64_i32_37 : i32 to vector<8x1xi32>
    %130 = arith.addi %128, %129 : vector<8x1xi32>
    %131 = vector.broadcast %130 : vector<8x1xi32> to vector<8x128xi32>
    %132 = arith.cmpi eq, %2, %131 : vector<8x128xi32>
    %cst_38 = arith.constant 0.000000e+00 : f32
    %133 = vector.broadcast %cst_38 : f32 to vector<8x128xf32>
    %134 = arith.select %132, %0, %133 : vector<8x128xi1>, vector<8x128xf32>
    %cst_39 = arith.constant dense<0.000000e+00> : vector<8xf32>
    %135 = vector.multi_reduction <add>, %134, %cst_39 [1] : vector<8x128xf32> to vector<8xf32>
    %136 = vector.shape_cast %135 : vector<8xf32> to vector<8x1xf32>
    %c2_i32 = arith.constant 2 : i32
    %137 = vector.broadcast %c2_i32 : i32 to vector<8x1xi32>
    %138 = arith.addi %8, %137 : vector<8x1xi32>
    %c88_i32_40 = arith.constant 88 : i32
    %139 = vector.broadcast %c88_i32_40 : i32 to vector<8x1xi32>
    %140 = arith.cmpi slt, %138, %139 : vector<8x1xi32>
    %c-100_i32_41 = arith.constant -100 : i32
    %141 = vector.broadcast %c-100_i32_41 : i32 to vector<8x1xi32>
    %142 = arith.cmpi ne, %128, %141 : vector<8x1xi32>
    %143 = arith.andi %140, %142 : vector<8x1xi1>
    %144 = arith.subf %127, %136 : vector<8x1xf32>
    %cst_42 = arith.constant 0.000000e+00 : f32
    %145 = vector.broadcast %cst_42 : f32 to vector<8x1xf32>
    %146 = arith.select %143, %144, %145 : vector<8x1xi1>, vector<8x1xf32>
    %147 = arith.addf %117, %146 : vector<8x1xf32>
    %cst_43 = arith.constant 1.000000e+00 : f32
    %cst_44 = arith.constant 0.000000e+00 : f32
    %148 = vector.broadcast %cst_43 : f32 to vector<8x1xf32>
    %149 = vector.broadcast %cst_44 : f32 to vector<8x1xf32>
    %150 = arith.select %143, %148, %149 : vector<8x1xi1>, vector<8x1xf32>
    %151 = arith.addf %121, %150 : vector<8x1xf32>
    %cst_45 = arith.constant 0.000000e+00 : f32
    %152 = vector.broadcast %cst_45 : f32 to vector<8x128xf32>
    %153 = arith.select %40, %59, %152 : vector<8x128xi1>, vector<8x128xf32>
    %cst_46 = arith.constant dense<0.000000e+00> : vector<8xf32>
    %154 = vector.multi_reduction <add>, %153, %cst_46 [1] : vector<8x128xf32> to vector<8xf32>
    %155 = vector.shape_cast %154 : vector<8xf32> to vector<8x1xf32>
    %156 = math.log %155 : vector<8x1xf32>
    %157 = arith.addf %156, %44 : vector<8x1xf32>
    %158 = vector.extract_strided_slice %1 {offsets = [0, 3], sizes = [8, 1], strides = [1, 1]} : vector<8x4xi32> to vector<8x1xi32>
    %c96_i32_47 = arith.constant 96 : i32
    %159 = vector.broadcast %c96_i32_47 : i32 to vector<8x1xi32>
    %160 = arith.addi %158, %159 : vector<8x1xi32>
    %161 = vector.broadcast %160 : vector<8x1xi32> to vector<8x128xi32>
    %162 = arith.cmpi eq, %2, %161 : vector<8x128xi32>
    %cst_48 = arith.constant 0.000000e+00 : f32
    %163 = vector.broadcast %cst_48 : f32 to vector<8x128xf32>
    %164 = arith.select %162, %0, %163 : vector<8x128xi1>, vector<8x128xf32>
    %cst_49 = arith.constant dense<0.000000e+00> : vector<8xf32>
    %165 = vector.multi_reduction <add>, %164, %cst_49 [1] : vector<8x128xf32> to vector<8xf32>
    %166 = vector.shape_cast %165 : vector<8xf32> to vector<8x1xf32>
    %c3_i32 = arith.constant 3 : i32
    %167 = vector.broadcast %c3_i32 : i32 to vector<8x1xi32>
    %168 = arith.addi %8, %167 : vector<8x1xi32>
    %c88_i32_50 = arith.constant 88 : i32
    %169 = vector.broadcast %c88_i32_50 : i32 to vector<8x1xi32>
    %170 = arith.cmpi slt, %168, %169 : vector<8x1xi32>
    %c-100_i32_51 = arith.constant -100 : i32
    %171 = vector.broadcast %c-100_i32_51 : i32 to vector<8x1xi32>
    %172 = arith.cmpi ne, %158, %171 : vector<8x1xi32>
    %173 = arith.andi %170, %172 : vector<8x1xi1>
    %174 = arith.subf %157, %166 : vector<8x1xf32>
    %cst_52 = arith.constant 0.000000e+00 : f32
    %175 = vector.broadcast %cst_52 : f32 to vector<8x1xf32>
    %176 = arith.select %173, %174, %175 : vector<8x1xi1>, vector<8x1xf32>
    %177 = arith.addf %147, %176 : vector<8x1xf32>
    %cst_53 = arith.constant 1.000000e+00 : f32
    %cst_54 = arith.constant 0.000000e+00 : f32
    %178 = vector.broadcast %cst_53 : f32 to vector<8x1xf32>
    %179 = vector.broadcast %cst_54 : f32 to vector<8x1xf32>
    %180 = arith.select %173, %178, %179 : vector<8x1xi1>, vector<8x1xf32>
    %181 = arith.addf %151, %180 : vector<8x1xf32>
    %182 = vector.shape_cast %177 : vector<8x1xf32> to vector<1x8x1xf32>
    %cst_55 = arith.constant dense<0.000000e+00> : vector<1xf32>
    %183 = vector.multi_reduction <add>, %182, %cst_55 [1, 2] : vector<1x8x1xf32> to vector<1xf32>
    %184 = vector.shape_cast %183 : vector<1xf32> to vector<1x1x1xf32>
    %185 = vector.extract %184[0, 0, 0] : f32 from vector<1x1x1xf32>
    %186 = vector.shape_cast %181 : vector<8x1xf32> to vector<1x8x1xf32>
    %cst_56 = arith.constant dense<0.000000e+00> : vector<1xf32>
    %187 = vector.multi_reduction <add>, %186, %cst_56 [1, 2] : vector<1x8x1xf32> to vector<1xf32>
    %188 = vector.shape_cast %187 : vector<1xf32> to vector<1x1x1xf32>
    %189 = vector.extract %188[0, 0, 0] : f32 from vector<1x1x1xf32>
    %190 = tpu.iota {dimensions = array<i32: 0>} : vector<8x128xi32>
    %191 = tpu.iota {dimensions = array<i32: 1>} : vector<8x128xi32>
    %c0_i32_57 = arith.constant 0 : i32
    %192 = vector.broadcast %c0_i32_57 : i32 to vector<8x128xi32>
    %193 = arith.cmpi eq, %190, %192 : vector<8x128xi32>
    %c0_i32_58 = arith.constant 0 : i32
    %194 = vector.broadcast %c0_i32_58 : i32 to vector<8x128xi32>
    %195 = arith.cmpi eq, %191, %194 : vector<8x128xi32>
    %196 = arith.andi %193, %195 : vector<8x128xi1>
    %c1_i32_59 = arith.constant 1 : i32
    %197 = vector.broadcast %c1_i32_59 : i32 to vector<8x128xi32>
    %198 = arith.cmpi eq, %191, %197 : vector<8x128xi32>
    %199 = arith.andi %193, %198 : vector<8x128xi1>
    %cst_60 = arith.constant 0.000000e+00 : f32
    %200 = vector.broadcast %189 : f32 to vector<8x128xf32>
    %201 = vector.broadcast %cst_60 : f32 to vector<8x128xf32>
    %202 = arith.select %199, %200, %201 : vector<8x128xi1>, vector<8x128xf32>
    %203 = vector.broadcast %185 : f32 to vector<8x128xf32>
    %204 = arith.select %196, %203, %202 : vector<8x128xi1>, vector<8x128xf32>
    %c0_61 = arith.constant 0 : index
    %c0_62 = arith.constant 0 : index
    %205 = vector.load %arg3[%c0_61, %c0_62] : memref<8x128xf32, #tpu.memory_space<vmem>>, vector<8x128xf32>
    tpu.vector_store %arg3[%c0_61, %c0_62], %204 {strides = array<i32>} : memref<8x128xf32, #tpu.memory_space<vmem>>, vector<8x128xf32>,
    return
  }
  func.func @transform_0(%arg0: i32) -> (i32, i32) {
    %c0_i32 = arith.constant 0 : i32
    %c0_i32_0 = arith.constant 0 : i32
    return %arg0, %c0_i32 : i32, i32
  }
  func.func @transform_1(%arg0: i32) -> (i32, i32) {
    %c0_i32 = arith.constant 0 : i32
    %c0_i32_0 = arith.constant 0 : i32
    return %arg0, %c0_i32 : i32, i32
  }
  func.func @transform_2(%arg0: i32) -> (i32, i32) {
    %c0_i32 = arith.constant 0 : i32
    %c0_i32_0 = arith.constant 0 : i32
    return %arg0, %c0_i32 : i32, i32
  }
}

</mosaic_0001>

<llo_original>
// kernel: tpu_custom_call.1
$region0: #{tpu_custom_call.1}
  #allocation0 [shape = 'u32[]', space=smem, size = 0x4, offset = 0x4, fixed_abs, tag = 'smem constant byte address 0x4 - core index']
  #allocation1 [shape = 'u32[144,128]{1,0:T(1,128)}', space=vmem, size = 0x12000, scoped, tag = 'internal scratch']
  %s0 = inlined_call_operand.vmem [shape: f32[22,128], index: 0, kind: input, shape index: {}]
  %s1 = inlined_call_operand.vmem [shape: s32[22,4], index: 1, kind: input, shape index: {}]
  %s2 = inlined_call_operand.hbm [shape: f32[24,128], index: 2, kind: output, shape index: {}]
  %s3 = sld [smem:[#allocation0]]
  $region41: #{tpu_custom_call.1} parent=0
    _
  %s5 = ssub.s32 1, %s3
  %s6 = scalar_select 0, %s5, %s3
  $region1: #{tpu_custom_call.1} parent=0
    #allocation2 [shape = 'u8[8192]{0}', space=vmem, size = 0x2000, scoped, tag = 'output window, operand 0']
    #allocation3 [shape = 's32[2]{0}', space=sflag, size = 0x8, scoped, tag = 'scoped memory for tpu_custom_call.1']
    %7 = vsyncpa [#allocation3], 0
    %s8 = scalar_lea.sflag [#allocation3], 1
    %9 = vsyncpa %s8, 0
    loop: start=0, step=1, limit=5
    $region2: #{tpu_custom_call.1} parent=1 // loop_pre_header
      _
    $region3: #{tpu_custom_call.1} parent=1 // loop_header
      %s11 = sphi 0, %s15
      %p12 = scmp.ge.s32.totalorder %s11, 5
      %s21 = sphi 0, %s23
      %s24 = sphi 0, %s21
      %s25 = sphi 0, %s24
      %s41 = sphi 0, %s25
      %s47 = sphi 0, %s49
      %s50 = sphi 0, %s47
      %s51 = sphi 0, %s50
      %s67 = sphi 0, %s51
      %s73 = sphi 0, %s75
      %s76 = sphi 0, %s73
      %s77 = sphi 0, %s76
      %s93 = sphi 0, %s77
    $region4: #{tpu_custom_call.1} parent=1 // loop_header_branch
      %14 = sbr.rel (%p12) target = $region8
    $region5: #{tpu_custom_call.1} parent=1 // loop_body
      %s16 = ssub.s32 %s11, 1
      %s17 = ssub.s32 %s11, 2
      %s18 = sadd.s32 %s11, 1
      %s19 = ssub.s32 %s11, %s18
      %p20 = scmp.eq.s32.totalorder %s19, 0
      %s22 = sadd.s32 %s21, 1
      %s23 = scalar_select %p20, %s21, %s22
      %p26 = pneg %p20
      %p27 = scmp.eq.s32.totalorder %s11, 2
      %p28 = por %p26, %p27
      %p29 = scmp.ne.s32.totalorder %s21, %s24
      %p30 = scmp.eq.s32.totalorder %s11, 0
      %p31 = por %p29, %p30
      %p32 = scmp.ne.s32.totalorder %s21, %s24
      %p33 = scmp.eq.s32.totalorder %s16, 2
      %p34 = por %p32, %p33
      %p35 = scmp.ne.s32.totalorder %s24, %s25
      %p36 = scmp.eq.s32.totalorder %s16, 0
      %p37 = por %p35, %p36
      %p38 = scmp.ne.s32.totalorder %s24, %s25
      %p39 = scmp.eq.s32.totalorder %s17, 2
      %p40 = por %p38, %p39
      %p42 = scmp.ne.s32.totalorder %s25, %s41
      %p43 = scmp.eq.s32.totalorder %s17, 0
      %p44 = por %p42, %p43
      %s45 = ssub.s32 %s11, %s18
      %p46 = scmp.eq.s32.totalorder %s45, 0
      %s48 = sadd.s32 %s47, 1
      %s49 = scalar_select %p46, %s47, %s48
      %p52 = pneg %p46
      %p53 = scmp.eq.s32.totalorder %s11, 2
      %p54 = por %p52, %p53
      %p55 = scmp.ne.s32.totalorder %s47, %s50
      %p56 = scmp.eq.s32.totalorder %s11, 0
      %p57 = por %p55, %p56
      %p58 = scmp.ne.s32.totalorder %s47, %s50
      %p59 = scmp.eq.s32.totalorder %s16, 2
      %p60 = por %p58, %p59
      %p61 = scmp.ne.s32.totalorder %s50, %s51
      %p62 = scmp.eq.s32.totalorder %s16, 0
      %p63 = por %p61, %p62
      %p64 = scmp.ne.s32.totalorder %s50, %s51
      %p65 = scmp.eq.s32.totalorder %s17, 2
      %p66 = por %p64, %p65
      %p68 = scmp.ne.s32.totalorder %s51, %s67
      %p69 = scmp.eq.s32.totalorder %s17, 0
      %p70 = por %p68, %p69
      %s71 = ssub.s32 %s11, %s18
      %p72 = scmp.eq.s32.totalorder %s71, 0
      %s74 = sadd.s32 %s73, 1
      %s75 = scalar_select %p72, %s73, %s74
      %p78 = pneg %p72
      %p79 = scmp.eq.s32.totalorder %s11, 2
      %p80 = por %p78, %p79
      %p81 = scmp.ne.s32.totalorder %s73, %s76
      %p82 = scmp.eq.s32.totalorder %s11, 0
      %p83 = por %p81, %p82
      %p84 = scmp.ne.s32.totalorder %s73, %s76
      %p85 = scmp.eq.s32.totalorder %s16, 2
      %p86 = por %p84, %p85
      %p87 = scmp.ne.s32.totalorder %s76, %s77
      %p88 = scmp.eq.s32.totalorder %s16, 0
      %p89 = por %p87, %p88
      %p90 = scmp.ne.s32.totalorder %s76, %s77
      %p91 = scmp.eq.s32.totalorder %s17, 2
      %p92 = por %p90, %p91
      %p94 = scmp.ne.s32.totalorder %s77, %s93
      %p95 = scmp.eq.s32.totalorder %s17, 0
      %p96 = por %p94, %p95
      %p97 = scmp.le.s32.totalorder 1, %s11
      %p98 = scmp.lt.s32.totalorder %s11, 4
      %p99 = pnand %p97, %p98
      %p100 = pneg %p99
      // Predicated region
      $region9: #{tpu_custom_call.1} parent=5 // pred_check
        _
      $region10: #{tpu_custom_call.1} parent=5 // pred_check_branch
        %102 = sbr.rel (%p99) target = $region12
      $region11: #{tpu_custom_call.1} parent=5 // pred_region
        %s103 = ssub.s32 %s11, 1
      $region12: #{tpu_custom_call.1} parent=5 // pred_fallthru
        _
      %p104 = scmp.lt.s32.totalorder %s11, 3
      // Predicated region
      $region13: #{tpu_custom_call.1} parent=5 // pred_check
        %p105 = pneg %p104
      $region14: #{tpu_custom_call.1} parent=5 // pred_check_branch
        %107 = sbr.rel (%p105) target = $region16
      $region15: #{tpu_custom_call.1} parent=5 // pred_region
        // Predicated region
        $region17: #{tpu_custom_call.1} parent=15 // pred_check
          %p108 = pneg %p31
        $region18: #{tpu_custom_call.1} parent=15 // pred_check_branch
          %110 = sbr.rel (%p108) target = $region20
        $region19: #{tpu_custom_call.1} parent=15 // pred_region
          %p111 = scmp.lt.s32.totalorder %s11, 2
          %s112 = scalar_select %p111, %s11, 2
          %s113 = smul.addr %s112, 8
          %s114 = scalar_lea.vmem %s0, %s113
        $region20: #{tpu_custom_call.1} parent=15 // pred_fallthru
          _
        // Predicated region
        $region21: #{tpu_custom_call.1} parent=15 // pred_check
          %p115 = pneg %p57
        $region22: #{tpu_custom_call.1} parent=15 // pred_check_branch
          %117 = sbr.rel (%p115) target = $region24
        $region23: #{tpu_custom_call.1} parent=15 // pred_region
          %p118 = scmp.lt.s32.totalorder %s11, 2
          %s119 = scalar_select %p118, %s11, 2
          %s120 = smul.addr %s119, 8
          %s121 = scalar_lea.vmem %s1, %s120
        $region24: #{tpu_custom_call.1} parent=15 // pred_fallthru
          _
      $region16: #{tpu_custom_call.1} parent=5 // pred_fallthru
        _
      %p122 = scmp.le.s32.totalorder 1, %s11
      %p123 = scmp.lt.s32.totalorder %s11, 4
      %p124 = pnand %p122, %p123
      %p125 = pneg %p124
      // Predicated region
      $region25: #{tpu_custom_call.1} parent=5 // pred_check
        _
      $region26: #{tpu_custom_call.1} parent=5 // pred_check_branch
        %127 = sbr.rel (%p124) target = $region28
      $region27: #{tpu_custom_call.1} parent=5 // pred_region
        %s128 = ssub.s32 %s11, 1
        %p129 = scmp.lt.s32.totalorder %s16, 2
        %s130 = scalar_select %p129, %s16, 2
        %s131 = smul.addr %s130, 8
        %s132 = scalar_lea.vmem %s0, %s131
        %p133 = pneg %p37
        %p134 = pneg %p34
        %p135 = scmp.lt.s32.totalorder %s16, 2
        %s136 = scalar_select %p135, %s16, 2
        %s137 = smul.addr %s136, 8
        %s138 = scalar_lea.vmem %s1, %s137
        %p139 = pneg %p63
        %p140 = pneg %p60
        %p141 = pneg %p89
        %p142 = pneg %p86
        %s143 = sand.u32 %s76, 1
        %s144 = scalar_lea.sflag [#allocation3], %s143
        %s145 = sand.u32 %s76, 1
        %s146 = smul.addr %s145, 8
        %s147 = scalar_lea.vmem [#allocation2], %s146
        %p148 = scmp.lt.s32.totalorder %s16, 2
        %s149 = scalar_select %p148, %s16, 2
        %s150 = smul.addr %s149, 8
        %s151 = scalar_lea.vmem %s0, %s150
        %p152 = scmp.lt.s32.totalorder %s16, 2
        %s153 = scalar_select %p152, %s16, 2
        %s154 = smul.addr %s153, 8
        %s155 = scalar_lea.vmem %s1, %s154
        %v156 = vld [vmem:[%s151] sm:$0xff]
        %v157 = vld [vmem:[%s155] sm:$0xff]
        %v158 = vlaneseq
        %v159 = vand.u32 %v158, 127
        %v160 = vlaneseq
        %v161 = vshrl.u32 %v160, 7
        %s162 = smul.u32 %s16, 8
        %v163 = vstv %s162
        %v164 = vadd.s32 %v161, %v163
        %v165 = vmul.u32 %v164, 4
        %vm166 = vcmp.ge.s32.totalorder %v159, 0
        %vm167 = vcmp.lt.s32.totalorder %v159, 32
        %vm168 = vmand %vm166, %vm167
        %v169 = vsel %vm168, %v156, -inf
        %170 = vmax.xlane.f32.xlu0 %v169
        %v171 = vpop.xlane.xlu0 %170
        %vm172 = vcmp.ge.s32.totalorder %v159, 32
        %vm173 = vcmp.lt.s32.totalorder %v159, 64
        %vm174 = vmand %vm172, %vm173
        %v175 = vsel %vm174, %v156, -inf
        %176 = vmax.xlane.f32.xlu0 %v175
        %v177 = vpop.xlane.xlu0 %176
        %vm178 = vcmp.ge.s32.totalorder %v159, 64
        %vm179 = vcmp.lt.s32.totalorder %v159, 96
        %vm180 = vmand %vm178, %vm179
        %v181 = vsel %vm180, %v156, -inf
        %182 = vmax.xlane.f32.xlu0 %v181
        %v183 = vpop.xlane.xlu0 %182
        %vm184 = vcmp.ge.s32.totalorder %v159, 96
        %vm185 = vcmp.lt.s32.totalorder %v159, 128
        %vm186 = vmand %vm184, %vm185
        %v187 = vsel %vm186, %v156, -inf
        %188 = vmax.xlane.f32.xlu0 %v187
        %v189 = vpop.xlane.xlu0 %188
        %v190 = vsel %vm168, %v171, 0.0
        %v191 = vsel %vm174, %v177, %v190
        %v192 = vsel %vm180, %v183, %v191
        %v193 = vsel %vm186, %v189, %v192
        %v194 = vsub.f32 %v156, %v193
        %v195 = vmul.f32 %v194, 1.442695
        %v196 = vpow.pop %v195
        %v197 = vsel %vm168, %v196, 0.0
        %198 = vadd.xlane.f32.xlu0 %v197
        %v199 = vpop.xlane.xlu0 %198
        %v200 = vlog2.pop %v199
        %v201 = vmul.f32 %v200, 0.6931472
        %v202 = vadd.f32 %v201, %v171
        %203 = vset.pattern.permute.xlu0 0
        %204 = vperm.xlu0 %203, %v157
        %v205 = vpop.permute.xlu0 %204
        %vm206 = vcmp.eq.s32.totalorder %v159, %v205
        %v207 = vsel %vm206, %v156, 0.0
        %208 = vadd.xlane.f32.xlu0 %v207
        %v209 = vpop.xlane.xlu0 %208
        %vm210 = vcmp.lt.s32.totalorder %v165, 88
        %vm211 = vcmp.ne.s32.totalorder %v157, 4294967196
        %vm212 = vmand %vm210, %vm211
        %v213 = vsub.f32 %v202, %v209
        %v214 = vsel %vm212, %v213, 0.0
        %v215 = vadd.f32 %v214, 0.0
        %v216 = vsel %vm212, 1.0, 0.0
        %v217 = vadd.f32 %v216, 0.0
        %v218 = vsel %vm174, %v196, 0.0
        %219 = vadd.xlane.f32.xlu0 %v218
        %v220 = vpop.xlane.xlu0 %219
        %v221 = vlog2.pop %v220
        %v222 = vmul.f32 %v221, 0.6931472
        %v223 = vadd.f32 %v222, %v177
        %v224 = vadd.s32 %v157, 32
        %225 = vset.pattern.permute.xlu0 1
        %226 = vperm.xlu0 %225, %v224
        %v227 = vpop.permute.xlu0 %226
        %vm228 = vcmp.eq.s32.totalorder %v159, %v227
        %v229 = vsel %vm228, %v156, 0.0
        %230 = vadd.xlane.f32.xlu0 %v229
        %v231 = vpop.xlane.xlu0 %230
        %v232 = vadd.s32 %v165, 1
        %vm233 = vcmp.lt.s32.totalorder %v232, 88
        %vm234 = vmand %vm233, %vm211
        %v235 = vsub.f32 %v223, %v231
        %v236 = vsel %vm234, %v235, 0.0
        %238 = vrot.lane.b32.xlu0 %v236, 127
        %v239 = vpop.permute.xlu0 %238
        %v241 = vadd.f32 %v215, %v239
        %v242 = vsel %vm234, 1.0, 0.0
        %244 = vrot.lane.b32.xlu0 %v242, 127
        %v245 = vpop.permute.xlu0 %244
        %v247 = vadd.f32 %v217, %v245
        %v248 = vsel %vm180, %v196, 0.0
        %249 = vadd.xlane.f32.xlu0 %v248
        %v250 = vpop.xlane.xlu0 %249
        %v251 = vlog2.pop %v250
        %v252 = vmul.f32 %v251, 0.6931472
        %v253 = vadd.f32 %v252, %v183
        %v254 = vadd.s32 %v157, 64
        %255 = vset.pattern.permute.xlu0 2
        %256 = vperm.xlu0 %255, %v254
        %v257 = vpop.permute.xlu0 %256
        %vm258 = vcmp.eq.s32.totalorder %v159, %v257
        %v259 = vsel %vm258, %v156, 0.0
        %260 = vadd.xlane.f32.xlu0 %v259
        %v261 = vpop.xlane.xlu0 %260
        %v262 = vadd.s32 %v165, 2
        %vm263 = vcmp.lt.s32.totalorder %v262, 88
        %vm264 = vmand %vm263, %vm211
        %v265 = vsub.f32 %v253, %v261
        %v266 = vsel %vm264, %v265, 0.0
        %268 = vrot.lane.b32.xlu0 %v266, 126
        %v269 = vpop.permute.xlu0 %268
        %v271 = vadd.f32 %v241, %v269
        %v272 = vsel %vm264, 1.0, 0.0
        %274 = vrot.lane.b32.xlu0 %v272, 126
        %v275 = vpop.permute.xlu0 %274
        %v277 = vadd.f32 %v247, %v275
        %v278 = vsel %vm186, %v196, 0.0
        %279 = vadd.xlane.f32.xlu0 %v278
        %v280 = vpop.xlane.xlu0 %279
        %v281 = vlog2.pop %v280
        %v282 = vmul.f32 %v281, 0.6931472
        %v283 = vadd.f32 %v282, %v189
        %v284 = vadd.s32 %v157, 96
        %285 = vset.pattern.permute.xlu0 3
        %286 = vperm.xlu0 %285, %v284
        %v287 = vpop.permute.xlu0 %286
        %vm288 = vcmp.eq.s32.totalorder %v159, %v287
        %v289 = vsel %vm288, %v156, 0.0
        %290 = vadd.xlane.f32.xlu0 %v289
        %v291 = vpop.xlane.xlu0 %290
        %v292 = vadd.s32 %v165, 3
        %vm293 = vcmp.lt.s32.totalorder %v292, 88
        %vm294 = vmand %vm293, %vm211
        %v295 = vsub.f32 %v283, %v291
        %v296 = vsel %vm294, %v295, 0.0
        %298 = vrot.lane.b32.xlu0 %v296, 125
        %v299 = vpop.permute.xlu0 %298
        %v301 = vadd.f32 %v271, %v299
        %v302 = vsel %vm294, 1.0, 0.0
        %304 = vrot.lane.b32.xlu0 %v302, 125
        %v305 = vpop.permute.xlu0 %304
        %v307 = vadd.f32 %v277, %v305
        %vm308 = vcmask 7168
        %v309 = vsel %vm308, %v301, 0.0
        %310 = vadd.xlane.f32.xlu0 %v309
        %v311 = vpop.xlane.xlu0 %310
        %v312 = vrot.slane %v311, 4
        %v313 = vadd.f32 %v311, %v312
        %v314 = vrot.slane %v313, 2
        %v315 = vadd.f32 %v313, %v314
        %v316 = vrot.slane %v315, 1
        %v317 = vadd.f32 %v315, %v316
        %s318 = vtos %v317
        %v319 = vsel %vm308, %v307, 0.0
        %320 = vadd.xlane.f32.xlu0 %v319
        %v321 = vpop.xlane.xlu0 %320
        %v322 = vrot.slane %v321, 4
        %v323 = vadd.f32 %v321, %v322
        %v324 = vrot.slane %v323, 2
        %v325 = vadd.f32 %v323, %v324
        %v326 = vrot.slane %v325, 1
        %v327 = vadd.f32 %v325, %v326
        %s328 = vtos %v327
        %vm329 = vcmp.eq.s32.totalorder %v161, 0
        %vm330 = vcmp.eq.s32.totalorder %v159, 0
        %vm331 = vmand %vm329, %vm330
        %vm332 = vcmp.eq.s32.totalorder %v159, 1
        %vm333 = vmand %vm329, %vm332
        %v334 = vstv %s328
        %v335 = vsel %vm333, %v334, 0.0
        %v336 = vstv %s318
        %v337 = vsel %vm331, %v336, %v335
        %338 = vst [vmem:[%s147] sm:$0xff] %v337
        %s339 = sand.u32 %s76, 1
        %s340 = scalar_lea.sflag [#allocation3], %s339
        %s341 = sand.u32 %s76, 1
        %s342 = smul.addr %s341, 8
        %s343 = scalar_lea.vmem [#allocation2], %s342
        // Predicated region
        $region29: #{tpu_custom_call.1} parent=27 // pred_check
          %p344 = pneg %p86
        $region30: #{tpu_custom_call.1} parent=27 // pred_check_branch
          %346 = sbr.rel (%p344) target = $region32
        $region31: #{tpu_custom_call.1} parent=27 // pred_region
          %s348 = ssub.s32 128, 128
          %349 = vsyncadd %s340, %s348
          %s350 = smul.addr %s16, 128
          %s351 = scalar_lea.hbm %s2, %s350
          %s353 = sshll.u32 %s343, 4
          %s354 = int_to_ptr.vmem [resolvable:$true] %s353
          %356 = dma.vmem_to_hbm [thread:$0]  %s354, 128, %s351, %s340
        $region32: #{tpu_custom_call.1} parent=27 // pred_fallthru
          _
      $region28: #{tpu_custom_call.1} parent=5 // pred_fallthru
        _
      %p357 = scmp.le.s32.totalorder 2, %s11
      // Predicated region
      $region33: #{tpu_custom_call.1} parent=5 // pred_check
        %p358 = pneg %p357
      $region34: #{tpu_custom_call.1} parent=5 // pred_check_branch
        %360 = sbr.rel (%p358) target = $region36
      $region35: #{tpu_custom_call.1} parent=5 // pred_region
        %s361 = ssub.s32 %s11, 2
        // Predicated region
        $region37: #{tpu_custom_call.1} parent=35 // pred_check
          %p362 = pneg %p92
        $region38: #{tpu_custom_call.1} parent=35 // pred_check_branch
          %364 = sbr.rel (%p362) target = $region40
        $region39: #{tpu_custom_call.1} parent=35 // pred_region
          %s365 = sand.u32 %s77, 1
          %s366 = scalar_lea.sflag [#allocation3], %s365
          %s367 = sand.u32 %s77, 1
          %s368 = smul.addr %s367, 8
          %s369 = scalar_lea.vmem [#allocation2], %s368
          %370 = dma.done %s366, 128
        $region40: #{tpu_custom_call.1} parent=35 // pred_fallthru
          _
      $region36: #{tpu_custom_call.1} parent=5 // pred_fallthru
        _
    $region6: #{tpu_custom_call.1} parent=1 // loop_footer
      %s15 = sadd.s32 1, %s11
    $region7: #{tpu_custom_call.1} parent=1 // loop_footer_branch
      %10 = sbr.rel target = $region3
    $region8: #{tpu_custom_call.1} parent=1 // loop_exit
      _
    %371 = vsyncpa [#allocation3], 1
    %s372 = scalar_lea.sflag [#allocation3], 1
    %373 = vsyncpa %s372, 1

</llo_original>
